<compile_context>
chip_gen: v7x
topology: tpu7x:2x2x1
jax: 0.10.0
libtpu: 0.0.40
codegen_flags: <defaults>
</compile_context>

<pallas_src>
import functools

import jax
import jax.numpy as jnp
from jax.experimental import pallas as pl
from jax.experimental.pallas import tpu as pltpu

IMAGENET_MEAN = (0.485, 0.456, 0.406)
IMAGENET_STD = (0.229, 0.224, 0.225)

_BLOCK_BUDGET_BYTES = 4 * 1024 * 1024   # ~4 MiB per block (near-roofline on all gens)
_VMEM_LIMIT_BYTES = 32 * 1024 * 1024    # fits v5e/v6e/v7x scoped-VMEM constraints


def _round_down(v, m):
    return (v // m) * m


def _round_up(v, m):
    return -(-v // m) * m


def _innormalize_kernel(x_ref, o_ref, *, mean, std, num_channels):
    """out[r, :] = x[r, :] * std[r % C] + mean[r % C] for the current tile."""
    tile_r = x_ref.shape[0]

    # Global row index of each tile row -> channel index (rows are b*C + c).
    # Correct across row-tile boundaries even when tile_r % C != 0.
    row0 = pl.program_id(0) * tile_r
    rows = row0 + jax.lax.broadcasted_iota(jnp.int32, (tile_r, 1), 0)
    ch = rows % num_channels

    # Per-row scale/shift from compile-time constants via a short where-chain
    # (pure VPU work, no gather, no extra HBM traffic; hidden under the DMA).
    scale = jnp.full((tile_r, 1), std[0], jnp.float32)
    shift = jnp.full((tile_r, 1), mean[0], jnp.float32)
    for c in range(1, num_channels):
        scale = jnp.where(ch == c, jnp.float32(std[c]), scale)
        shift = jnp.where(ch == c, jnp.float32(mean[c]), shift)

    x = x_ref[...].astype(jnp.float32)
    o_ref[...] = (x * scale + shift).astype(o_ref.dtype)


def _pick_tiles(R, HW, itemsize, block_budget_bytes):
    """Byte-budgeted (tile_r, tile_c); prefer full-width contiguous blocks."""
    full_width_rows = block_budget_bytes // max(1, HW * itemsize)

    if full_width_rows >= R:
        # Whole array fits in one block.  Split the row axis into two roughly
        # balanced blocks when possible so both v7x TensorCores get work.
        tile_c = HW
        tile_r = _round_up(pl.cdiv(R, 2), 8) if R >= 16 else R
    elif full_width_rows >= 8:
        # Full-width blocks (single contiguous DMA each), row-tiled.
        tile_c = HW
        tile_r = _round_down(full_width_rows, 8)
    else:
        # Spatial dim too wide for 8 full-width rows: tile columns too.
        tile_r = R if R <= 8 else 8
        tile_c = _round_down(block_budget_bytes // (tile_r * itemsize), 128)
        if tile_c <= 0 or tile_c >= HW:
            tile_c = HW
    return tile_r, tile_c


def imagenet_innormalize(x, *, mean=IMAGENET_MEAN, std=IMAGENET_STD,
                         block_budget_bytes=_BLOCK_BUDGET_BYTES):
    """Pallas TPU implementation of IMAGENETINNORMALIZE.forward.

    Args:
      x: (B, C, H, W) ImageNet-normalized image tensor.
    Returns:
      (B, C, H, W) tensor: x * std + mean (per channel), same dtype as x.
    """
    B, C, H, W = x.shape
    assert C == len(mean) == len(std), "channel count must match mean/std"

    R, HW = B * C, H * W
    x2 = x.reshape(R, HW)            # contiguous flatten -> lane-dense last axis
    itemsize = x.dtype.itemsize

    tile_r, tile_c = _pick_tiles(R, HW, itemsize, block_budget_bytes)
    grid = (pl.cdiv(R, tile_r), pl.cdiv(HW, tile_c))

    kernel = functools.partial(
        _innormalize_kernel,
        mean=tuple(float(m) for m in mean),
        std=tuple(float(s) for s in std),
        num_channels=C,
    )

    out = pl.pallas_call(
        kernel,
        out_shape=jax.ShapeDtypeStruct((R, HW), x.dtype),
        grid=grid,
        in_specs=[pl.BlockSpec((tile_r, tile_c), lambda i, j: (i, j))],
        out_specs=pl.BlockSpec((tile_r, tile_c), lambda i, j: (i, j)),
        compiler_params=pltpu.CompilerParams(
            dimension_semantics=("parallel", "parallel"),
            vmem_limit_bytes=_VMEM_LIMIT_BYTES),
        cost_estimate=pl.CostEstimate(
            flops=2 * R * HW,
            transcendentals=0,
            bytes_accessed=2 * R * HW * itemsize),
    )(x2)

    return out.reshape(B, C, H, W)


if __name__ == "__main__":
    C = 3

    def reference(x):
        mean = jnp.asarray(IMAGENET_MEAN, jnp.float32).reshape(1, C, 1, 1)
        std = jnp.asarray(IMAGENET_STD, jnp.float32).reshape(1, C, 1, 1)
        return (x.astype(jnp.float32) * std + mean).astype(x.dtype)

    # 1) Default path: whole array fits in a single contiguous block.
    x1 = jax.random.normal(jax.random.PRNGKey(0), (2, C, 16, 16), dtype=jnp.float32)
    y1 = imagenet_innormalize(x1)
    jax.block_until_ready(y1)
    assert y1.shape == x1.shape and y1.dtype == x1.dtype
    assert jnp.allclose(y1, reference(x1), atol=1e-6, rtol=1e-6)

    # 2) Force the full-width row-tiled path (tile_r=8, grid=(3,1)); checks the
    #    channel modulo across row-tile boundaries where tile_r % C != 0.
    x2 = jax.random.normal(jax.random.PRNGKey(1), (8, C, 16, 16), dtype=jnp.float32)
    y2 = imagenet_innormalize(x2, block_budget_bytes=8 * 1024)
    jax.block_until_ready(y2)
    assert jnp.allclose(y2, reference(x2), atol=1e-6, rtol=1e-6)

    # 3) Force the column-tiled path with an unaligned (masked) edge block.
    x3 = jax.random.normal(jax.random.PRNGKey(2), (2, C, 32, 32), dtype=jnp.float32)
    y3 = imagenet_innormalize(x3, block_budget_bytes=16 * 1024)
    jax.block_until_ready(y3)
    assert jnp.allclose(y3, reference(x3), atol=1e-6, rtol=1e-6)

    print("KERNEL_OK")
</pallas_src>

<mosaic_0001>
module attributes {stable_mosaic.version = 11 : i64} {
  func.func @_innormalize_kernel(%arg0: i32, %arg1: i32, %arg2: memref<6x256xf32, #tpu.memory_space<vmem>>, %arg3: memref<6x256xf32, #tpu.memory_space<vmem>>) attributes {dimension_semantics = [#tpu.dimension_semantics<parallel>, #tpu.dimension_semantics<parallel>], iteration_bounds = array<i64: 1, 1>, scalar_prefetch = 0 : i64, scratch_operands = 0 : i64, tpu.core_type = #tpu.core_type<tc>, window_params = [{transform_indices = @transform_0, window_bounds = array<i64: 6, 256>}, {transform_indices = @transform_1, window_bounds = array<i64: 6, 256>}]} {
    %c6_i32 = arith.constant 6 : i32
    %0 = arith.muli %arg0, %c6_i32 : i32
    %1 = tpu.iota {dimensions = array<i32: 0>} : vector<6x1xi32>
    %2 = vector.broadcast %0 : i32 to vector<6x1xi32>
    %3 = arith.addi %2, %1 : vector<6x1xi32>
    %c3_i32 = arith.constant 3 : i32
    %c0_i32 = arith.constant 0 : i32
    %4 = arith.cmpi eq, %c3_i32, %c0_i32 : i32
    %c1_i32 = arith.constant 1 : i32
    %5 = arith.select %4, %c1_i32, %c3_i32 : i32
    %6 = vector.broadcast %5 : i32 to vector<6x1xi32>
    %7 = arith.remsi %3, %6 : vector<6x1xi32>
    %c0_i32_0 = arith.constant 0 : i32
    %8 = vector.broadcast %c0_i32_0 : i32 to vector<6x1xi32>
    %9 = arith.cmpi ne, %7, %8 : vector<6x1xi32>
    %c0_i32_1 = arith.constant 0 : i32
    %10 = vector.broadcast %c0_i32_1 : i32 to vector<6x1xi32>
    %11 = arith.cmpi slt, %7, %10 : vector<6x1xi32>
    %c0_i32_2 = arith.constant 0 : i32
    %12 = arith.cmpi slt, %5, %c0_i32_2 : i32
    %13 = vector.broadcast %12 : i1 to vector<6x1xi1>
    %14 = vector.broadcast %13 : vector<6x1xi1> to vector<6x1xi1>
    %15 = arith.xori %11, %14 : vector<6x1xi1>
    %16 = arith.andi %15, %9 : vector<6x1xi1>
    %17 = vector.broadcast %5 : i32 to vector<6x1xi32>
    %18 = arith.addi %7, %17 : vector<6x1xi32>
    %19 = arith.select %16, %18, %7 : vector<6x1xi1>, vector<6x1xi32>
    %cst = arith.constant 2.290000e-01 : f32
    %20 = vector.broadcast %cst : f32 to vector<6x1xf32>
    %cst_3 = arith.constant 4.850000e-01 : f32
    %21 = vector.broadcast %cst_3 : f32 to vector<6x1xf32>
    %c1_i32_4 = arith.constant 1 : i32
    %22 = vector.broadcast %c1_i32_4 : i32 to vector<6x1xi32>
    %23 = arith.cmpi eq, %19, %22 : vector<6x1xi32>
    %cst_5 = arith.constant 2.240000e-01 : f32
    %24 = vector.broadcast %cst_5 : f32 to vector<6x1xf32>
    %25 = arith.select %23, %24, %20 : vector<6x1xi1>, vector<6x1xf32>
    %c1_i32_6 = arith.constant 1 : i32
    %26 = vector.broadcast %c1_i32_6 : i32 to vector<6x1xi32>
    %27 = arith.cmpi eq, %19, %26 : vector<6x1xi32>
    %cst_7 = arith.constant 4.560000e-01 : f32
    %28 = vector.broadcast %cst_7 : f32 to vector<6x1xf32>
    %29 = arith.select %27, %28, %21 : vector<6x1xi1>, vector<6x1xf32>
    %c2_i32 = arith.constant 2 : i32
    %30 = vector.broadcast %c2_i32 : i32 to vector<6x1xi32>
    %31 = arith.cmpi eq, %19, %30 : vector<6x1xi32>
    %cst_8 = arith.constant 2.250000e-01 : f32
    %32 = vector.broadcast %cst_8 : f32 to vector<6x1xf32>
    %33 = arith.select %31, %32, %25 : vector<6x1xi1>, vector<6x1xf32>
    %c2_i32_9 = arith.constant 2 : i32
    %34 = vector.broadcast %c2_i32_9 : i32 to vector<6x1xi32>
    %35 = arith.cmpi eq, %19, %34 : vector<6x1xi32>
    %cst_10 = arith.constant 4.060000e-01 : f32
    %36 = vector.broadcast %cst_10 : f32 to vector<6x1xf32>
    %37 = arith.select %35, %36, %29 : vector<6x1xi1>, vector<6x1xf32>
    %c0 = arith.constant 0 : index
    %c0_11 = arith.constant 0 : index
    %38 = vector.load %arg2[%c0, %c0_11] : memref<6x256xf32, #tpu.memory_space<vmem>>, vector<6x256xf32>
    %39 = vector.broadcast %33 : vector<6x1xf32> to vector<6x256xf32>
    %40 = arith.mulf %38, %39 : vector<6x256xf32>
    %41 = vector.broadcast %37 : vector<6x1xf32> to vector<6x256xf32>
    %42 = arith.addf %40, %41 : vector<6x256xf32>
    %c0_12 = arith.constant 0 : index
    %c0_13 = arith.constant 0 : index
    %43 = vector.load %arg3[%c0_12, %c0_13] : memref<6x256xf32, #tpu.memory_space<vmem>>, vector<6x256xf32>
    tpu.vector_store %arg3[%c0_12, %c0_13], %42 {strides = array<i32>} : memref<6x256xf32, #tpu.memory_space<vmem>>, vector<6x256xf32>,
    return
  }
  func.func @transform_0(%arg0: i32, %arg1: i32) -> (i32, i32) {
    %c0_i32 = arith.constant 0 : i32
    return %arg0, %arg1 : i32, i32
  }
  func.func @transform_1(%arg0: i32, %arg1: i32) -> (i32, i32) {
    %c0_i32 = arith.constant 0 : i32
    return %arg0, %arg1 : i32, i32
  }
}

</mosaic_0001>

<llo_original>
// kernel: tpu_custom_call.1
$region0: #{tpu_custom_call.1}
  #allocation0 [shape = 'u32[]', space=smem, size = 0x4, offset = 0x4, fixed_abs, tag = 'smem constant byte address 0x4 - core index']
  #allocation1 [shape = 'u32[144,128]{1,0:T(1,128)}', space=vmem, size = 0x12000, scoped, tag = 'internal scratch']
  %s0 = inlined_call_operand.hbm [shape: f32[6,256], index: 0, kind: input, shape index: {}]
  %s1 = inlined_call_operand.hbm [shape: f32[6,256], index: 1, kind: output, shape index: {}]
  %s2 = sld [smem:[#allocation0]]
  $region18: #{tpu_custom_call.1} parent=0
    _
  %s4 = ssub.s32 1, %s2
  %s5 = scalar_select 0, %s4, %s2
  $region1: #{tpu_custom_call.1} parent=0
    #allocation2 [shape = 'u8[8192]{0}', space=vmem, size = 0x2000, scoped, tag = 'input window, operand 0, single buffered']
    #allocation3 [shape = 's32[1]{0}', space=sflag, size = 0x4, scoped, tag = 'scoped memory for tpu_custom_call.1']
    #allocation4 [shape = 's32[1]{0}', space=sflag, size = 0x4, scoped, tag = 'scoped memory for tpu_custom_call.1']
    #allocation5 [shape = 'u8[8192]{0}', space=vmem, size = 0x2000, scoped, tag = 'output window, operand 0, single buffered']
    %6 = vsyncpa [#allocation3], 0
    %7 = vsyncpa [#allocation4], 0
    // Predicated region
    $region2: #{tpu_custom_call.1} parent=1 // pred_check
      _
    $region3: #{tpu_custom_call.1} parent=1 // pred_check_branch
      %9 = sbr.rel (0) target = $region5
    $region4: #{tpu_custom_call.1} parent=1 // pred_region
      %s11 = ssub.s32 256, 256
      %12 = vsyncadd [#allocation3], %s11
      %s14 = sshll.u32 [#allocation2], 4
      %s15 = int_to_ptr.vmem [resolvable:$true] %s14
      %17 = dma.hbm_to_vmem [thread:$0]  %s0, 256, %s15, [#allocation3]
    $region5: #{tpu_custom_call.1} parent=1 // pred_fallthru
      _
    // Predicated region
    $region6: #{tpu_custom_call.1} parent=1 // pred_check
      _
    $region7: #{tpu_custom_call.1} parent=1 // pred_check_branch
      %19 = sbr.rel (0) target = $region9
    $region8: #{tpu_custom_call.1} parent=1 // pred_region
      %20 = dma.done [#allocation3], 256
    $region9: #{tpu_custom_call.1} parent=1 // pred_fallthru
      _
    %s21 = smul.u32 0, 6
    %v22 = vlaneseq
    %v23 = vshrl.u32 %v22, 7
    %v24 = vstv %s21
    %v25 = vadd.s32 %v24, %v23
    %vm26 = vcmp.lt.s32.totalorder %v25, 0
    %v27 = vsub.s32 0, %v25
    %v28 = vsel %vm26, %v27, %v25
    %v29 = vmul.u32.u64.compose %v28, 2863311531
    %v30 = vextract.low.u32 %v29
    %v31 = vextract.high.u32 %v29
    %v32 = vshrl.u32 %v31, 1
    %v33 = vmul.u32 %v32, 3
    %v34 = vsub.s32 %v28, %v33
    %v35 = vsub.s32 0, %v34
    %v36 = vsel %vm26, %v35, %v34
    %vm37 = vcmp.ne.s32.totalorder %v36, 0
    %vm38 = vcmp.lt.s32.totalorder %v36, 0
    %vm39 = vmand %vm38, %vm37
    %v40 = vadd.s32 %v36, 3
    %v41 = vsel %vm39, %v40, %v36
    %vm42 = vcmp.eq.s32.totalorder %v41, 1
    %v43 = vsel %vm42, 0.224, 0.229
    %v44 = vsel %vm42, 0.456, 0.485
    %vm45 = vcmp.eq.s32.totalorder %v41, 2
    %v46 = vsel %vm45, 0.225, %v43
    %v47 = vsel %vm45, 0.406, %v44
    %v48 = vld [vmem:[#allocation2] sm:$0x3f]
    %v49 = vld [vmem:[#allocation2 + $0x8] sm:$0x3f]
    %v50 = vmul.f32 %v48, %v46
    %v51 = vmul.f32 %v49, %v46
    %v52 = vadd.f32 %v50, %v47
    %v53 = vadd.f32 %v51, %v47
    %54 = vst [vmem:[#allocation5] sm:$0x3f] %v52
    %55 = vst [vmem:[#allocation5 + $0x8] sm:$0x3f] %v53
    // Predicated region
    $region10: #{tpu_custom_call.1} parent=1 // pred_check
      _
    $region11: #{tpu_custom_call.1} parent=1 // pred_check_branch
      %57 = sbr.rel (0) target = $region13
    $region12: #{tpu_custom_call.1} parent=1 // pred_region
      %s59 = ssub.s32 256, 256
      %60 = vsyncadd [#allocation4], %s59
      %s62 = sshll.u32 [#allocation5], 4
      %s63 = int_to_ptr.vmem [resolvable:$true] %s62
      %65 = dma.vmem_to_hbm [thread:$0]  %s63, 256, %s1, [#allocation4]
    $region13: #{tpu_custom_call.1} parent=1 // pred_fallthru
      _
    // Predicated region
    $region14: #{tpu_custom_call.1} parent=1 // pred_check
      _
    $region15: #{tpu_custom_call.1} parent=1 // pred_check_branch
      %67 = sbr.rel (0) target = $region17
    $region16: #{tpu_custom_call.1} parent=1 // pred_region
      %68 = dma.done [#allocation4], 256
    $region17: #{tpu_custom_call.1} parent=1 // pred_fallthru
      _
    %69 = vsyncpa [#allocation3], 1
    %70 = vsyncpa [#allocation4], 1

</llo_original>
